<compile_context>
chip_gen: v7x
topology: tpu7x:2x2x1
jax: 0.10.0
libtpu: 0.0.40
codegen_flags: <defaults>
</compile_context>

<pallas_src>
import jax
import jax.numpy as jnp
from jax.experimental import pallas as pl
from jax.experimental.pallas import tpu as pltpu

_LANE = 128


def _round_up(v, m):
    return (v + m - 1) // m * m


def autopad(k, p=None, d=1):
    """Pad to 'same' shape outputs (mirrors the PyTorch helper)."""
    if d > 1:
        k = d * (k - 1) + 1 if isinstance(k, int) else [d * (x - 1) + 1 for x in k]
    if p is None:
        p = k // 2 if isinstance(k, int) else [x // 2 for x in k]
    return p


# ----------------------------------------------------------------------------
# Pallas kernel: fused matmul (patches kept in natural (M, K) layout) +
# BatchNorm (scale, bias) + SiLU, lane-dense (C2, tile_m) output, bf16 store.
# ----------------------------------------------------------------------------
def _conv_bn_silu_kernel(w_ref, p_ref, scale_ref, bias_ref, o_ref):
    # w_ref:     (C2, K)      bf16   conv weights (no BN folded in)
    # p_ref:     (tile_m, K)  bf16   im2col patches, natural layout (K last)
    # scale_ref: (C2, 1)      f32    BN scale  = gamma / sqrt(var + eps)
    # bias_ref:  (C2, 1)      f32    BN bias   = beta - mean * scale
    # o_ref:     (C2, tile_m) bf16   lane-dense output (spatial on lanes)
    acc = jax.lax.dot_general(
        w_ref[...], p_ref[...],
        dimension_numbers=(((1,), (1,)), ((), ())),      # contract K with K
        preferred_element_type=jnp.float32)              # (C2, tile_m) f32
    acc = acc * scale_ref[...] + bias_ref[...]           # BatchNorm (f32 epilogue)
    sig = pl.reciprocal(1.0 + jnp.exp(-acc), approx=True)  # exp + rcp -> EUP slot
    o_ref[...] = (acc * sig).astype(o_ref.dtype)          # SiLU, cast only at store


def conv_bn_silu(w_bf16, patches_bf16, scale_f32, bias_f32, max_tile_m=8192):
    """out(N, C2, Mp) = silu(scale * (w @ patches^T) + bias), bf16 output.

    patches_bf16: (N, Mp, K) with Mp a multiple of the chosen tile (padded by caller).
    """
    C2, K = w_bf16.shape
    N, Mp, K2 = patches_bf16.shape
    assert K2 == K

    tile_m = min(_round_up(max_tile_m, _LANE), Mp)
    assert Mp % tile_m == 0 and tile_m % _LANE == 0

    # Rough double-buffered VMEM need (generous; never below the 32 MiB default).
    dbl = 2 * tile_m * (K + C2) * 2 + C2 * K * 2 + 4 * C2 * 4
    vmem_limit = min(max(2 * dbl, 32 * 1024 * 1024), 100 * 1024 * 1024)

    return pl.pallas_call(
        _conv_bn_silu_kernel,
        out_shape=jax.ShapeDtypeStruct((N, C2, Mp), jnp.bfloat16),
        grid_spec=pltpu.PrefetchScalarGridSpec(
            num_scalar_prefetch=0,
            grid=(N, Mp // tile_m),
            in_specs=[
                pl.BlockSpec((C2, K), lambda n, i: (0, 0)),
                pl.BlockSpec((None, tile_m, K), lambda n, i: (n, i, 0)),
                pl.BlockSpec((C2, 1), lambda n, i: (0, 0)),
                pl.BlockSpec((C2, 1), lambda n, i: (0, 0)),
            ],
            out_specs=pl.BlockSpec((None, C2, tile_m), lambda n, i: (n, 0, i)),
        ),
        compiler_params=pltpu.CompilerParams(
            dimension_semantics=("parallel", "parallel"),
            vmem_limit_bytes=vmem_limit),
    )(w_bf16, patches_bf16, scale_f32, bias_f32)


# ----------------------------------------------------------------------------
# Focus forward (wrapper: bf16 layout glue + one Pallas kernel, no extra
# transposes of the big tensors)
# ----------------------------------------------------------------------------
def focus_forward(x_nchw, weight, gamma, beta, running_mean, running_var,
                  eps=1e-5, k=1, s=1, p=None, d=1, g=1):
    """x_nchw: (N, C1, H, W); weight: (C2, 4*C1, kh, kw) (PyTorch OIHW, bias=False).

    Returns (N, C2, Ho, Wo) in bfloat16.
    """
    assert g == 1  # TODO(synk): grouped convolution (g>1) not implemented; Focus default is g=1.
    N, C1, H, W = x_nchw.shape
    C2, Cin, kh, kw = weight.shape
    assert Cin == 4 * C1

    pad = autopad(k, p, d)
    ph, pw = (pad, pad) if isinstance(pad, int) else (pad[0], pad[1])
    sh = sw = s
    dh = dw = d

    # Space-to-depth in NHWC, bf16 glue. Channel order matches
    # torch.cat((x[...,::2,::2], x[...,1::2,::2], x[...,::2,1::2], x[...,1::2,1::2]), 1)
    x = jnp.transpose(x_nchw, (0, 2, 3, 1)).astype(jnp.bfloat16)        # (N, H, W, C1)
    y = jnp.concatenate(
        [x[:, ::2, ::2, :], x[:, 1::2, ::2, :], x[:, ::2, 1::2, :], x[:, 1::2, 1::2, :]],
        axis=-1)                                                        # (N, H/2, W/2, 4*C1)
    _, Hh, Wh, C4 = y.shape

    # im2col (k=1 default -> plain reshape); patch element order (kh, kw, cin),
    # channels-last so no transpose of the big patch matrix is needed.
    yp = jnp.pad(y, ((0, 0), (ph, ph), (pw, pw), (0, 0)))
    Ho = (Hh + 2 * ph - dh * (kh - 1) - 1) // sh + 1
    Wo = (Wh + 2 * pw - dw * (kw - 1) - 1) // sw + 1
    cols = []
    for i in range(kh):
        for j in range(kw):
            cols.append(yp[:, i * dh:i * dh + sh * (Ho - 1) + 1:sh,
                              j * dw:j * dw + sw * (Wo - 1) + 1:sw, :])
    K = kh * kw * C4
    M = Ho * Wo
    patches = jnp.concatenate(cols, axis=-1).reshape(N, M, K)           # (N, M, K) bf16

    # Pad the per-image spatial dim to a lane-dense multiple of 128.
    Mp = _round_up(M, _LANE)
    if Mp != M:
        patches = jnp.pad(patches, ((0, 0), (0, Mp - M), (0, 0)))

    # Conv weights in (kh, kw, cin) patch order; BN scale/bias stay in the f32 epilogue.
    w2d = jnp.transpose(weight, (0, 2, 3, 1)).reshape(C2, K).astype(jnp.bfloat16)
    bn_scale = (gamma / jnp.sqrt(running_var + eps)).astype(jnp.float32)
    bn_bias = (beta - running_mean * bn_scale).astype(jnp.float32)

    out = conv_bn_silu(w2d, patches, bn_scale[:, None], bn_bias[:, None])  # (N, C2, Mp) bf16
    if Mp != M:
        out = out[:, :, :M]
    return out.reshape(N, C2, Ho, Wo)                                    # already NCHW


# ----------------------------------------------------------------------------
# Pure-JAX reference (independent path, f32 end-to-end) for a correctness check
# ----------------------------------------------------------------------------
def focus_reference(x_nchw, weight, gamma, beta, running_mean, running_var,
                    eps=1e-5, k=1, s=1, p=None, d=1):
    y = jnp.concatenate([x_nchw[..., ::2, ::2], x_nchw[..., 1::2, ::2],
                         x_nchw[..., ::2, 1::2], x_nchw[..., 1::2, 1::2]], axis=1)
    pad = autopad(k, p, d)
    z = jax.lax.conv_general_dilated(
        y, weight, window_strides=(s, s), padding=[(pad, pad), (pad, pad)],
        rhs_dilation=(d, d), dimension_numbers=("NCHW", "OIHW", "NCHW"))
    sc = gamma / jnp.sqrt(running_var + eps)
    bs = beta - running_mean * sc
    z = z * sc[None, :, None, None] + bs[None, :, None, None]
    return z * jax.nn.sigmoid(z)


if __name__ == "__main__":
    # Focus(c1=4, c2=32, k=1, s=1, act=True)  -- fresh eval-mode BatchNorm stats
    c1, c2 = 4, 32
    N, H, W = 2, 16, 16

    key = jax.random.PRNGKey(0)
    kx, kw_, kg = jax.random.split(key, 3)
    x = jax.random.normal(kx, (N, c1, H, W), jnp.float32)            # NCHW like PyTorch
    weight = 0.1 * jax.random.normal(kw_, (c2, 4 * c1, 1, 1), jnp.float32)
    gamma = 1.0 + 0.1 * jax.random.normal(kg, (c2,), jnp.float32)
    beta = 0.01 * jnp.arange(c2, dtype=jnp.float32)
    running_mean = jnp.zeros((c2,), jnp.float32)
    running_var = jnp.ones((c2,), jnp.float32)

    out = focus_forward(x, weight, gamma, beta, running_mean, running_var)
    out = jax.block_until_ready(out)
    assert out.shape == (N, c2, H // 2, W // 2), out.shape

    ref = focus_reference(x, weight, gamma, beta, running_mean, running_var)
    out_f32 = out.astype(jnp.float32)
    max_err = float(jnp.max(jnp.abs(out_f32 - ref)))
    assert bool(jnp.allclose(out_f32, ref, atol=3e-2, rtol=3e-2)), max_err

    print("KERNEL_OK")
</pallas_src>

<mosaic_0001>
module attributes {stable_mosaic.version = 11 : i64} {
  func.func @_conv_bn_silu_kernel(%arg0: i32, %arg1: i32, %arg2: memref<32x16xbf16, #tpu.memory_space<vmem>>, %arg3: memref<1x128x16xbf16, #tpu.memory_space<vmem>>, %arg4: memref<32x1xf32, #tpu.memory_space<vmem>>, %arg5: memref<32x1xf32, #tpu.memory_space<vmem>>, %arg6: memref<1x32x128xbf16, #tpu.memory_space<vmem>>) attributes {dimension_semantics = [#tpu.dimension_semantics<parallel>, #tpu.dimension_semantics<parallel>], iteration_bounds = array<i64: 2, 1>, scalar_prefetch = 0 : i64, scratch_operands = 0 : i64, tpu.core_type = #tpu.core_type<tc>, window_params = [{pipeline_mode = #tpu.pipeline_mode<synchronous>, transform_indices = @transform_0, window_bounds = array<i64: 32, 16>}, {transform_indices = @transform_1, window_bounds = array<i64: 1, 128, 16>}, {pipeline_mode = #tpu.pipeline_mode<synchronous>, transform_indices = @transform_2, window_bounds = array<i64: 32, 1>}, {pipeline_mode = #tpu.pipeline_mode<synchronous>, transform_indices = @transform_3, window_bounds = array<i64: 32, 1>}, {transform_indices = @transform_4, window_bounds = array<i64: 1, 32, 128>}]} {
    %c0 = arith.constant 0 : index
    %c0_0 = arith.constant 0 : index
    %0 = vector.load %arg2[%c0, %c0_0] : memref<32x16xbf16, #tpu.memory_space<vmem>>, vector<32x16xbf16>
    %c0_1 = arith.constant 0 : index
    %c0_2 = arith.constant 0 : index
    %c0_3 = arith.constant 0 : index
    %1 = vector.load %arg3[%c0_1, %c0_2, %c0_3] : memref<1x128x16xbf16, #tpu.memory_space<vmem>>, vector<1x128x16xbf16>
    %2 = vector.shape_cast %1 : vector<1x128x16xbf16> to vector<128x16xbf16>
    %cst = arith.constant dense<0.000000e+00> : vector<32x128xf32>
    %3 = tpu.matmul %0, %2, %cst {dimension_numbers = #tpu.dot_dimension_numbers<[1], [1], [0], [0], [0, 0, 1, 0], [], []>} : vector<32x16xbf16>, vector<128x16xbf16>, vector<32x128xf32> -> vector<32x128xf32>
    %c0_4 = arith.constant 0 : index
    %c0_5 = arith.constant 0 : index
    %4 = vector.load %arg4[%c0_4, %c0_5] : memref<32x1xf32, #tpu.memory_space<vmem>>, vector<32x1xf32>
    %5 = vector.broadcast %4 : vector<32x1xf32> to vector<32x128xf32>
    %6 = arith.mulf %3, %5 : vector<32x128xf32>
    %c0_6 = arith.constant 0 : index
    %c0_7 = arith.constant 0 : index
    %7 = vector.load %arg5[%c0_6, %c0_7] : memref<32x1xf32, #tpu.memory_space<vmem>>, vector<32x1xf32>
    %8 = vector.broadcast %7 : vector<32x1xf32> to vector<32x128xf32>
    %9 = arith.addf %6, %8 : vector<32x128xf32>
    %cst_8 = arith.constant 0.000000e+00 : f32
    %10 = vector.broadcast %cst_8 : f32 to vector<32x128xf32>
    %11 = arith.subf %10, %9 : vector<32x128xf32>
    %12 = math.exp %11 : vector<32x128xf32>
    %cst_9 = arith.constant 1.000000e+00 : f32
    %13 = vector.broadcast %cst_9 : f32 to vector<32x128xf32>
    %14 = arith.addf %13, %12 : vector<32x128xf32>
    %15 = tpu.reciprocal %14 {approx = true} : vector<32x128xf32> -> vector<32x128xf32>
    %16 = arith.mulf %9, %15 : vector<32x128xf32>
    %17 = arith.truncf %16 : vector<32x128xf32> to vector<32x128xbf16>
    %c0_10 = arith.constant 0 : index
    %c0_11 = arith.constant 0 : index
    %c0_12 = arith.constant 0 : index
    %18 = vector.load %arg6[%c0_10, %c0_11, %c0_12] : memref<1x32x128xbf16, #tpu.memory_space<vmem>>, vector<1x32x128xbf16>
    %19 = vector.shape_cast %18 : vector<1x32x128xbf16> to vector<32x128xbf16>
    %20 = vector.shape_cast %17 : vector<32x128xbf16> to vector<1x32x128xbf16>
    tpu.vector_store %arg6[%c0_10, %c0_11, %c0_12], %20 {strides = array<i32>} : memref<1x32x128xbf16, #tpu.memory_space<vmem>>, vector<1x32x128xbf16>,
    return
  }
  func.func @transform_0(%arg0: i32, %arg1: i32) -> (i32, i32) {
    %c0_i32 = arith.constant 0 : i32
    %c0_i32_0 = arith.constant 0 : i32
    %c0_i32_1 = arith.constant 0 : i32
    return %c0_i32, %c0_i32_0 : i32, i32
  }
  func.func @transform_1(%arg0: i32, %arg1: i32) -> (i32, i32, i32) {
    %c0_i32 = arith.constant 0 : i32
    %c0_i32_0 = arith.constant 0 : i32
    return %arg0, %arg1, %c0_i32 : i32, i32, i32
  }
  func.func @transform_2(%arg0: i32, %arg1: i32) -> (i32, i32) {
    %c0_i32 = arith.constant 0 : i32
    %c0_i32_0 = arith.constant 0 : i32
    %c0_i32_1 = arith.constant 0 : i32
    return %c0_i32, %c0_i32_0 : i32, i32
  }
  func.func @transform_3(%arg0: i32, %arg1: i32) -> (i32, i32) {
    %c0_i32 = arith.constant 0 : i32
    %c0_i32_0 = arith.constant 0 : i32
    %c0_i32_1 = arith.constant 0 : i32
    return %c0_i32, %c0_i32_0 : i32, i32
  }
  func.func @transform_4(%arg0: i32, %arg1: i32) -> (i32, i32, i32) {
    %c0_i32 = arith.constant 0 : i32
    %c0_i32_0 = arith.constant 0 : i32
    return %arg0, %c0_i32, %arg1 : i32, i32, i32
  }
}

</mosaic_0001>

<llo_original>
// kernel: tpu_custom_call.1
$region0: #{tpu_custom_call.1}
  #allocation0 [shape = 'u32[]', space=smem, size = 0x4, offset = 0x4, fixed_abs, tag = 'smem constant byte address 0x4 - core index']
  #allocation1 [shape = 'u32[144,128]{1,0:T(1,128)}', space=vmem, size = 0x12000, scoped, tag = 'internal scratch']
  %s0 = inlined_call_operand.vmem [shape: bf16[32,16], index: 0, kind: input, shape index: {}]
  %s1 = inlined_call_operand.vmem [shape: bf16[2,128,16], index: 1, kind: input, shape index: {}]
  %s2 = inlined_call_operand.vmem [shape: f32[32,1], index: 2, kind: input, shape index: {}]
  %s3 = inlined_call_operand.vmem [shape: f32[32,1], index: 3, kind: input, shape index: {}]
  %s4 = inlined_call_operand.hbm [shape: bf16[2,32,128], index: 4, kind: output, shape index: {}]
  %s5 = sld [smem:[#allocation0]]
  $region49: #{tpu_custom_call.1} parent=0
    _
  %s7 = ssub.s32 1, %s5
  %s8 = scalar_select 0, %s7, %s5
  $region1: #{tpu_custom_call.1} parent=0
    #allocation2 [shape = 'u8[16384]{0}', space=vmem, size = 0x4000, scoped, tag = 'output window, operand 0']
    #allocation3 [shape = 's32[2]{0}', space=sflag, size = 0x8, scoped, tag = 'scoped memory for tpu_custom_call.1']
    %9 = vsyncpa [#allocation3], 0
    %s10 = scalar_lea.sflag [#allocation3], 1
    %11 = vsyncpa %s10, 0
    loop: start=0, step=1, limit=4
    $region2: #{tpu_custom_call.1} parent=1 // loop_pre_header
      _
    $region3: #{tpu_custom_call.1} parent=1 // loop_header
      %s13 = sphi 0, %s17
      %p14 = scmp.ge.s32.totalorder %s13, 4
      %s20 = sphi 0, %s32
      %s21 = sphi 0, %s28
      %s22 = sphi 0, %s20
      %s23 = sphi 0, %s21
      %s24 = sphi 0, %s22
      %s25 = sphi 0, %s23
      %s33 = sphi 0, %s33
      %s35 = sphi 0, %s33
      %s36 = sphi 0, %s35
      %s50 = sphi 0, %s36
      %s58 = sphi 0, %s60
      %s61 = sphi 0, %s58
      %s62 = sphi 0, %s61
      %s78 = sphi 0, %s62
      %s82 = sphi 0, %s82
      %s84 = sphi 0, %s82
      %s85 = sphi 0, %s84
      %s99 = sphi 0, %s85
      %s103 = sphi 0, %s103
      %s105 = sphi 0, %s103
      %s106 = sphi 0, %s105
      %s120 = sphi 0, %s106
      %s128 = sphi 0, %s130
      %s131 = sphi 0, %s128
      %s132 = sphi 0, %s131
      %s148 = sphi 0, %s132
    $region4: #{tpu_custom_call.1} parent=1 // loop_header_branch
      %16 = sbr.rel (%p14) target = $region8
    $region5: #{tpu_custom_call.1} parent=1 // loop_body
      %s18 = ssub.s32 %s13, 1
      %s19 = ssub.s32 %s13, 2
      %s26 = sadd.s32 1, %s21
      %p27 = scmp.ge.s32.totalorder %s26, 1
      %s28 = scalar_select %p27, 0, %s26
      %s29 = sadd.s32 1, %s20
      %s30 = scalar_select %p27, %s29, %s20
      %p31 = scmp.ge.s32.totalorder %s30, 2
      %s32 = scalar_select %p31, 0, %s30
      %s34 = sadd.s32 %s33, 1
      %p37 = scmp.eq.s32.totalorder %s13, 1
      %p38 = scmp.ne.s32.totalorder %s33, %s35
      %p39 = scmp.eq.s32.totalorder %s13, 0
      %p40 = por %p38, %p39
      %p41 = scmp.ne.s32.totalorder %s33, %s35
      %p42 = scmp.eq.s32.totalorder %s18, 1
      %p43 = por %p41, %p42
      %p44 = scmp.ne.s32.totalorder %s35, %s36
      %p45 = scmp.eq.s32.totalorder %s18, 0
      %p46 = por %p44, %p45
      %p47 = scmp.ne.s32.totalorder %s35, %s36
      %p48 = scmp.eq.s32.totalorder %s19, 1
      %p49 = por %p47, %p48
      %p51 = scmp.ne.s32.totalorder %s36, %s50
      %p52 = scmp.eq.s32.totalorder %s19, 0
      %p53 = por %p51, %p52
      %s54 = ssub.s32 %s20, %s32
      %s55 = ssub.s32 %s21, %s28
      %s56 = sor.u32 %s54, %s55
      %p57 = scmp.eq.s32.totalorder %s56, 0
      %s59 = sadd.s32 %s58, 1
      %s60 = scalar_select %p57, %s58, %s59
      %p63 = pneg %p57
      %p64 = scmp.eq.s32.totalorder %s13, 1
      %p65 = por %p63, %p64
      %p66 = scmp.ne.s32.totalorder %s58, %s61
      %p67 = scmp.eq.s32.totalorder %s13, 0
      %p68 = por %p66, %p67
      %p69 = scmp.ne.s32.totalorder %s58, %s61
      %p70 = scmp.eq.s32.totalorder %s18, 1
      %p71 = por %p69, %p70
      %p72 = scmp.ne.s32.totalorder %s61, %s62
      %p73 = scmp.eq.s32.totalorder %s18, 0
      %p74 = por %p72, %p73
      %p75 = scmp.ne.s32.totalorder %s61, %s62
      %p76 = scmp.eq.s32.totalorder %s19, 1
      %p77 = por %p75, %p76
      %p79 = scmp.ne.s32.totalorder %s62, %s78
      %p80 = scmp.eq.s32.totalorder %s19, 0
      %p81 = por %p79, %p80
      %s83 = sadd.s32 %s82, 1
      %p86 = scmp.eq.s32.totalorder %s13, 1
      %p87 = scmp.ne.s32.totalorder %s82, %s84
      %p88 = scmp.eq.s32.totalorder %s13, 0
      %p89 = por %p87, %p88
      %p90 = scmp.ne.s32.totalorder %s82, %s84
      %p91 = scmp.eq.s32.totalorder %s18, 1
      %p92 = por %p90, %p91
      %p93 = scmp.ne.s32.totalorder %s84, %s85
      %p94 = scmp.eq.s32.totalorder %s18, 0
      %p95 = por %p93, %p94
      %p96 = scmp.ne.s32.totalorder %s84, %s85
      %p97 = scmp.eq.s32.totalorder %s19, 1
      %p98 = por %p96, %p97
      %p100 = scmp.ne.s32.totalorder %s85, %s99
      %p101 = scmp.eq.s32.totalorder %s19, 0
      %p102 = por %p100, %p101
      %s104 = sadd.s32 %s103, 1
      %p107 = scmp.eq.s32.totalorder %s13, 1
      %p108 = scmp.ne.s32.totalorder %s103, %s105
      %p109 = scmp.eq.s32.totalorder %s13, 0
      %p110 = por %p108, %p109
      %p111 = scmp.ne.s32.totalorder %s103, %s105
      %p112 = scmp.eq.s32.totalorder %s18, 1
      %p113 = por %p111, %p112
      %p114 = scmp.ne.s32.totalorder %s105, %s106
      %p115 = scmp.eq.s32.totalorder %s18, 0
      %p116 = por %p114, %p115
      %p117 = scmp.ne.s32.totalorder %s105, %s106
      %p118 = scmp.eq.s32.totalorder %s19, 1
      %p119 = por %p117, %p118
      %p121 = scmp.ne.s32.totalorder %s106, %s120
      %p122 = scmp.eq.s32.totalorder %s19, 0
      %p123 = por %p121, %p122
      %s124 = ssub.s32 %s20, %s32
      %s125 = ssub.s32 %s21, %s28
      %s126 = sor.u32 %s124, %s125
      %p127 = scmp.eq.s32.totalorder %s126, 0
      %s129 = sadd.s32 %s128, 1
      %s130 = scalar_select %p127, %s128, %s129
      %p133 = pneg %p127
      %p134 = scmp.eq.s32.totalorder %s13, 1
      %p135 = por %p133, %p134
      %p136 = scmp.ne.s32.totalorder %s128, %s131
      %p137 = scmp.eq.s32.totalorder %s13, 0
      %p138 = por %p136, %p137
      %p139 = scmp.ne.s32.totalorder %s128, %s131
      %p140 = scmp.eq.s32.totalorder %s18, 1
      %p141 = por %p139, %p140
      %p142 = scmp.ne.s32.totalorder %s131, %s132
      %p143 = scmp.eq.s32.totalorder %s18, 0
      %p144 = por %p142, %p143
      %p145 = scmp.ne.s32.totalorder %s131, %s132
      %p146 = scmp.eq.s32.totalorder %s19, 1
      %p147 = por %p145, %p146
      %p149 = scmp.ne.s32.totalorder %s132, %s148
      %p150 = scmp.eq.s32.totalorder %s19, 0
      %p151 = por %p149, %p150
      %p152 = scmp.le.s32.totalorder 1, %s13
      %p153 = scmp.lt.s32.totalorder %s13, 3
      %p154 = pnand %p152, %p153
      %p155 = pneg %p154
      // Predicated region
      $region9: #{tpu_custom_call.1} parent=5 // pred_check
        _
      $region10: #{tpu_custom_call.1} parent=5 // pred_check_branch
        %157 = sbr.rel (%p154) target = $region12
      $region11: #{tpu_custom_call.1} parent=5 // pred_region
        %s158 = ssub.s32 %s13, 1
        // Predicated region
        $region13: #{tpu_custom_call.1} parent=11 // pred_check
          %p159 = pneg %p46
        $region14: #{tpu_custom_call.1} parent=11 // pred_check_branch
          %161 = sbr.rel (%p159) target = $region16
        $region15: #{tpu_custom_call.1} parent=11 // pred_region
          _
        $region16: #{tpu_custom_call.1} parent=11 // pred_fallthru
          _
        // Predicated region
        $region17: #{tpu_custom_call.1} parent=11 // pred_check
          %p162 = pneg %p95
        $region18: #{tpu_custom_call.1} parent=11 // pred_check_branch
          %164 = sbr.rel (%p162) target = $region20
        $region19: #{tpu_custom_call.1} parent=11 // pred_region
          _
        $region20: #{tpu_custom_call.1} parent=11 // pred_fallthru
          _
        // Predicated region
        $region21: #{tpu_custom_call.1} parent=11 // pred_check
          %p165 = pneg %p116
        $region22: #{tpu_custom_call.1} parent=11 // pred_check_branch
          %167 = sbr.rel (%p165) target = $region24
        $region23: #{tpu_custom_call.1} parent=11 // pred_region
          _
        $region24: #{tpu_custom_call.1} parent=11 // pred_fallthru
          _
      $region12: #{tpu_custom_call.1} parent=5 // pred_fallthru
        _
      %p168 = scmp.lt.s32.totalorder %s13, 2
      // Predicated region
      $region25: #{tpu_custom_call.1} parent=5 // pred_check
        %p169 = pneg %p168
      $region26: #{tpu_custom_call.1} parent=5 // pred_check_branch
        %171 = sbr.rel (%p169) target = $region28
      $region27: #{tpu_custom_call.1} parent=5 // pred_region
        // Predicated region
        $region29: #{tpu_custom_call.1} parent=27 // pred_check
          %p172 = pneg %p68
        $region30: #{tpu_custom_call.1} parent=27 // pred_check_branch
          %174 = sbr.rel (%p172) target = $region32
        $region31: #{tpu_custom_call.1} parent=27 // pred_region
          %s175 = smul.u32 16, %s21
          %p176 = scmp.lt.s32.totalorder %s20, 1
          %s177 = scalar_select %p176, %s20, 1
          %p178 = scmp.lt.s32.totalorder %s175, 15
          %s179 = scalar_select %p178, %s175, 15
          %s180 = smul.addr %s177, 16
          %s181 = sadd.s32 %s179, %s180
          %s182 = smul.addr %s181, 4
          %s183 = scalar_lea.vmem %s1, %s182
          %s184 = smul.u32 16, %s21
        $region32: #{tpu_custom_call.1} parent=27 // pred_fallthru
          _
      $region28: #{tpu_custom_call.1} parent=5 // pred_fallthru
        _
      %p185 = scmp.le.s32.totalorder 1, %s13
      %p186 = scmp.lt.s32.totalorder %s13, 3
      %p187 = pnand %p185, %p186
      %p188 = pneg %p187
      // Predicated region
      $region33: #{tpu_custom_call.1} parent=5 // pred_check
        _
      $region34: #{tpu_custom_call.1} parent=5 // pred_check_branch
        %190 = sbr.rel (%p187) target = $region36
      $region35: #{tpu_custom_call.1} parent=5 // pred_region
        %s191 = ssub.s32 %s13, 1
        %p192 = pneg %p46
        %p193 = pneg %p43
        %s194 = smul.u32 16, %s23
        %p195 = scmp.lt.s32.totalorder %s22, 1
        %s196 = scalar_select %p195, %s22, 1
        %p197 = scmp.lt.s32.totalorder %s194, 15
        %s198 = scalar_select %p197, %s194, 15
        %s199 = smul.addr %s196, 16
        %s200 = sadd.s32 %s198, %s199
        %s201 = smul.addr %s200, 4
        %s202 = scalar_lea.vmem %s1, %s201
        %p203 = pneg %p74
        %p204 = pneg %p71
        %p205 = pneg %p95
        %p206 = pneg %p92
        %p207 = pneg %p116
        %p208 = pneg %p113
        %p209 = pneg %p144
        %p210 = pneg %p141
        %s211 = sand.u32 %s131, 1
        %s212 = scalar_lea.sflag [#allocation3], %s211
        %s213 = sand.u32 %s131, 1
        %s214 = smul.addr %s213, 16
        %s215 = scalar_lea.vmem [#allocation2], %s214
        %s216 = smul.u32 16, %s23
        %p217 = scmp.lt.s32.totalorder %s22, 1
        %s218 = scalar_select %p217, %s22, 1
        %p219 = scmp.lt.s32.totalorder %s216, 15
        %s220 = scalar_select %p219, %s216, 15
        %s221 = smul.addr %s218, 16
        %s222 = sadd.s32 %s220, %s221
        %s223 = smul.addr %s222, 4
        %s224 = scalar_lea.vmem %s1, %s223
        %s225 = smul.u32 16, %s23
        %v227 = vld [vmem:[%s0] sm:$0xf]
        %v228 = vld [vmem:[%s0 + $0x4] sm:$0xf]
        %v229 = vld [vmem:[%s0 + $0x8] sm:$0xf]
        %v230 = vld [vmem:[%s0 + $0xc] sm:$0xf]
        %v231 = vld [vmem:[%s224] sm:$0xf]
        %v232 = vld [vmem:[%s224 + $0x4] sm:$0xf]
        %v233 = vld [vmem:[%s224 + $0x8] sm:$0xf]
        %v234 = vld [vmem:[%s224 + $0xc] sm:$0xf]
        %v235 = vld [vmem:[%s224 + $0x10] sm:$0xf]
        %v236 = vld [vmem:[%s224 + $0x14] sm:$0xf]
        %v237 = vld [vmem:[%s224 + $0x18] sm:$0xf]
        %v238 = vld [vmem:[%s224 + $0x1c] sm:$0xf]
        %v239 = vld [vmem:[%s224 + $0x20] sm:$0xf]
        %v240 = vld [vmem:[%s224 + $0x24] sm:$0xf]
        %v241 = vld [vmem:[%s224 + $0x28] sm:$0xf]
        %v242 = vld [vmem:[%s224 + $0x2c] sm:$0xf]
        %v243 = vld [vmem:[%s224 + $0x30] sm:$0xf]
        %v244 = vld [vmem:[%s224 + $0x34] sm:$0xf]
        %v245 = vld [vmem:[%s224 + $0x38] sm:$0xf]
        %v246 = vld [vmem:[%s224 + $0x3c] sm:$0xf]
        %v251 = vunpack.c.l.b16 %v227
        %v252 = vunpack.c.l.b16 %v228
        %v253 = vunpack.c.l.b16 %v229
        %v254 = vunpack.c.l.b16 %v230
        %v255 = vpack.c.b16 %v252, %v251
        %v256 = vpack.c.b16 %v254, %v253
        %v273 = vunpack.c.l.b16 %v231
        %v274 = vunpack.c.l.b16 %v232
        %v275 = vunpack.c.l.b16 %v233
        %v276 = vunpack.c.l.b16 %v234
        %v277 = vunpack.c.l.b16 %v235
        %v278 = vunpack.c.l.b16 %v236
        %v279 = vunpack.c.l.b16 %v237
        %v280 = vunpack.c.l.b16 %v238
        %v281 = vunpack.c.l.b16 %v239
        %v282 = vunpack.c.l.b16 %v240
        %v283 = vunpack.c.l.b16 %v241
        %v284 = vunpack.c.l.b16 %v242
        %v285 = vunpack.c.l.b16 %v243
        %v286 = vunpack.c.l.b16 %v244
        %v287 = vunpack.c.l.b16 %v245
        %v288 = vunpack.c.l.b16 %v246
        %v289 = vpack.c.b16 %v274, %v273
        %v290 = vpack.c.b16 %v276, %v275
        %v291 = vpack.c.b16 %v278, %v277
        %v292 = vpack.c.b16 %v280, %v279
        %v293 = vpack.c.b16 %v282, %v281
        %v294 = vpack.c.b16 %v284, %v283
        %v295 = vpack.c.b16 %v286, %v285
        %v296 = vpack.c.b16 %v288, %v287
        %vm297 = vcmask 130048
        %v299 = vsel %vm297, %v255, 0
        %v302 = vsel %vm297, %v256, 0
        %v305 = vsel %vm297, %v289, 0
        %v308 = vsel %vm297, %v290, 0
        %v311 = vsel %vm297, %v291, 0
        %v314 = vsel %vm297, %v292, 0
        %v317 = vsel %vm297, %v293, 0
        %v320 = vsel %vm297, %v294, 0
        %v323 = vsel %vm297, %v295, 0
        %v326 = vsel %vm297, %v296, 0
        %328 = vmatprep.subr.bf16.mxu0 0
        %329 = vmatpush1.bf16.xpose.msra.mxu0 %v305
        %330 = vmatprep.subr.bf16.mxu0 0
        %331 = vmatpush1.bf16.xpose.msra.mxu0 %v308
        %332 = vmatprep.subr.bf16.mxu0 0
        %333 = vmatpush1.bf16.xpose.msra.mxu0 %v311
        %334 = vmatprep.subr.bf16.mxu0 0
        %335 = vmatpush1.bf16.xpose.msra.mxu0 %v314
        %336 = vmatprep.subr.bf16.mxu0 0
        %337 = vmatpush1.bf16.xpose.msra.mxu0 %v317
        %338 = vmatprep.subr.bf16.mxu0 0
        %339 = vmatpush1.bf16.xpose.msra.mxu0 %v320
        %340 = vmatprep.subr.bf16.mxu0 0
        %341 = vmatpush1.bf16.xpose.msra.mxu0 %v323
        %342 = vmatprep.subr.bf16.mxu0 0
        %343 = vmatpush1.bf16.xpose.msra.mxu0 %v326
        %344 = vmatprep.subr.bf16.mxu0 0
        %345 = vmatpush1.bf16.xpose.msra.mxu0 0
        %346 = vmatprep.subr.bf16.mxu0 0
        %347 = vmatpush1.bf16.xpose.msra.mxu0 0
        %348 = vmatprep.subr.bf16.mxu0 0
        %349 = vmatpush1.bf16.xpose.msra.mxu0 0
        %350 = vmatprep.subr.bf16.mxu0 0
        %351 = vmatpush1.bf16.xpose.msra.mxu0 0
        %352 = vmatprep.subr.bf16.mxu0 0
        %353 = vmatpush1.bf16.xpose.msra.mxu0 0
        %354 = vmatprep.subr.bf16.mxu0 0
        %355 = vmatpush1.bf16.xpose.msra.mxu0 0
        %356 = vmatprep.subr.bf16.mxu0 0
        %357 = vmatpush1.bf16.xpose.msra.mxu0 0
        %358 = vmatprep.subr.bf16.mxu0 0
        %359 = vmatpush1.bf16.xpose.msra.mxu0 0
        %360 = vmatprep.mubr.bf16.mxu0 0
        %361 = vmatmul.mubr.bf16.gmra.mrb[0].mxu0 %v299
        %v362 = vpop.f32.mrb[0].mxu0
        %v363 = vadd.f32 0.0, %v362
        %v364 = vpop.f32.mrb[0].mxu0
        %v365 = vpop.f32.mrb[0].mxu0
        %v366 = vadd.f32 0.0, %v365
        %v367 = vpop.f32.mrb[0].mxu0
        %368 = vmatprep.mubr.bf16.mxu0 0
        %369 = vmatmul.mubr.bf16.gmra.mrb[0].mxu0 %v302
        %v370 = vpop.f32.mrb[0].mxu0
        %v371 = vadd.f32 0.0, %v370
        %v372 = vpop.f32.mrb[0].mxu0
        %v373 = vpop.f32.mrb[0].mxu0
        %v374 = vadd.f32 0.0, %v373
        %v375 = vpop.f32.mrb[0].mxu0
        %376 = vdwg.mxu0
        %v377 = vld [vmem:[%s2] sm:$0xff]
        %v378 = vld [vmem:[%s2 + $0x8] sm:$0xff]
        %v379 = vld [vmem:[%s2 + $0x10] sm:$0xff]
        %v380 = vld [vmem:[%s2 + $0x18] sm:$0xff]
        %382 = vset.pattern.permute.xlu0 0
        %383 = vperm.xlu0 %382, %v377
        %v384 = vpop.permute.xlu0 %383
        %387 = vset.pattern.permute.xlu0 0
        %388 = vperm.xlu0 %387, %v378
        %v389 = vpop.permute.xlu0 %388
        %392 = vset.pattern.permute.xlu0 0
        %393 = vperm.xlu0 %392, %v379
        %v394 = vpop.permute.xlu0 %393
        %397 = vset.pattern.permute.xlu0 0
        %398 = vperm.xlu0 %397, %v380
        %v399 = vpop.permute.xlu0 %398
        %v401 = vmul.f32 %v363, %v384
        %v402 = vmul.f32 %v366, %v389
        %v403 = vmul.f32 %v371, %v394
        %v404 = vmul.f32 %v374, %v399
        %v405 = vld [vmem:[%s3] sm:$0xff]
        %v406 = vld [vmem:[%s3 + $0x8] sm:$0xff]
        %v407 = vld [vmem:[%s3 + $0x10] sm:$0xff]
        %v408 = vld [vmem:[%s3 + $0x18] sm:$0xff]
        %410 = vset.pattern.permute.xlu0 0
        %411 = vperm.xlu0 %410, %v405
        %v412 = vpop.permute.xlu0 %411
        %415 = vset.pattern.permute.xlu0 0
        %416 = vperm.xlu0 %415, %v406
        %v417 = vpop.permute.xlu0 %416
        %420 = vset.pattern.permute.xlu0 0
        %421 = vperm.xlu0 %420, %v407
        %v422 = vpop.permute.xlu0 %421
        %425 = vset.pattern.permute.xlu0 0
        %426 = vperm.xlu0 %425, %v408
        %v427 = vpop.permute.xlu0 %426
        %v429 = vadd.f32 %v401, %v412
        %v430 = vadd.f32 %v402, %v417
        %v431 = vadd.f32 %v403, %v422
        %v432 = vadd.f32 %v404, %v427
        %v433 = vsub.f32 0.0, %v429
        %v434 = vsub.f32 0.0, %v430
        %v435 = vsub.f32 0.0, %v431
        %v436 = vsub.f32 0.0, %v432
        %v437 = vmul.f32 %v433, 1.442695
        %v438 = vpow.pop %v437
        %v439 = vmul.f32 %v434, 1.442695
        %v440 = vpow.pop %v439
        %v441 = vmul.f32 %v435, 1.442695
        %v442 = vpow.pop %v441
        %v443 = vmul.f32 %v436, 1.442695
        %v444 = vpow.pop %v443
        %v445 = vadd.f32 %v438, 1.0
        %v446 = vadd.f32 %v440, 1.0
        %v447 = vadd.f32 %v442, 1.0
        %v448 = vadd.f32 %v444, 1.0
        %v449 = vrcp.pop %v445
        %v450 = vrcp.pop %v446
        %v451 = vrcp.pop %v447
        %v452 = vrcp.pop %v448
        %v453 = vmul.f32 %v429, %v449
        %v454 = vmul.f32 %v430, %v450
        %v455 = vmul.f32 %v431, %v451
        %v456 = vmul.f32 %v432, %v452
        %v457 = vpack.c.bf16 %v454, %v453
        %v458 = vpack.c.bf16 %v456, %v455
        %v461 = vunpack.c.l.b16 %v457
        %v462 = vunpack.c.h.b16 %v457
        %v463 = vunpack.c.l.b16 %v458
        %v464 = vunpack.c.h.b16 %v458
        %v465 = vpack.c.b16 %v461, %v461
        %v466 = vpack.c.b16 %v462, %v462
        %v467 = vpack.c.b16 %v463, %v463
        %v468 = vpack.c.b16 %v464, %v464
        %473 = vst [vmem:[%s215] sm:$0xf] %v465
        %474 = vst [vmem:[%s215 + $0x4] sm:$0xf] %v466
        %475 = vst [vmem:[%s215 + $0x8] sm:$0xf] %v467
        %476 = vst [vmem:[%s215 + $0xc] sm:$0xf] %v468
        %s477 = sand.u32 %s131, 1
        %s478 = scalar_lea.sflag [#allocation3], %s477
        %s479 = sand.u32 %s131, 1
        %s480 = smul.addr %s479, 16
        %s481 = scalar_lea.vmem [#allocation2], %s480
        // Predicated region
        $region37: #{tpu_custom_call.1} parent=35 // pred_check
          %p482 = pneg %p141
        $region38: #{tpu_custom_call.1} parent=35 // pred_check_branch
          %484 = sbr.rel (%p482) target = $region40
        $region39: #{tpu_custom_call.1} parent=35 // pred_region
          %s486 = ssub.s32 256, 256
          %487 = vsyncadd %s478, %s486
          %s488 = smul.addr %s22, 4
          %s489 = sadd.s32 %s23, %s488
          %s490 = smul.addr %s489, 64
          %s491 = scalar_lea.hbm %s4, %s490
          %s492 = sshll.u32 %s481, 4
          %s493 = int_to_ptr.vmem [resolvable:$true] %s492
          %498 = dma.vmem_to_hbm [thread:$0]  %s493, 256, %s491, %s478, 64, 64, 4
        $region40: #{tpu_custom_call.1} parent=35 // pred_fallthru
          _
      $region36: #{tpu_custom_call.1} parent=5 // pred_fallthru
        _
      %p499 = scmp.le.s32.totalorder 2, %s13
      // Predicated region
      $region41: #{tpu_custom_call.1} parent=5 // pred_check
        %p500 = pneg %p499
      $region42: #{tpu_custom_call.1} parent=5 // pred_check_branch
        %502 = sbr.rel (%p500) target = $region44
      $region43: #{tpu_custom_call.1} parent=5 // pred_region
        %s503 = ssub.s32 %s13, 2
        // Predicated region
        $region45: #{tpu_custom_call.1} parent=43 // pred_check
          %p504 = pneg %p147
        $region46: #{tpu_custom_call.1} parent=43 // pred_check_branch
          %506 = sbr.rel (%p504) target = $region48
        $region47: #{tpu_custom_call.1} parent=43 // pred_region
          %s507 = sand.u32 %s132, 1
          %s508 = scalar_lea.sflag [#allocation3], %s507
          %s509 = sand.u32 %s132, 1
          %s510 = smul.addr %s509, 16
          %s511 = scalar_lea.vmem [#allocation2], %s510
          %512 = dma.done %s508, 256
        $region48: #{tpu_custom_call.1} parent=43 // pred_fallthru
          _
      $region44: #{tpu_custom_call.1} parent=5 // pred_fallthru
        _
    $region6: #{tpu_custom_call.1} parent=1 // loop_footer
      %s17 = sadd.s32 1, %s13
    $region7: #{tpu_custom_call.1} parent=1 // loop_footer_branch
      %12 = sbr.rel target = $region3
    $region8: #{tpu_custom_call.1} parent=1 // loop_exit
      _
    %513 = vsyncpa [#allocation3], 1
    %s514 = scalar_lea.sflag [#allocation3], 1
    %515 = vsyncpa %s514, 1

</llo_original>
